<compile_context>
chip_gen: v6e
topology: v6e:2x2x1
jax: 0.10.0
libtpu: 0.0.40
codegen_flags: <defaults>
</compile_context>

<pallas_src>
import jax
import jax.numpy as jnp
from jax.experimental import pallas as pl
from jax.experimental.pallas import tpu as pltpu


def _w_kernel(x_ref, w1_ref, s1_ref, w2_ref, b2_ref, o_ref):
    # x_ref : (NB, C, H, TW)   w1_ref: (M, C)   s1_ref: (M, 1)
    # w2_ref: (C, M)           b2_ref: (C, 1)   o_ref : (NB, C, TW)
    nb, _, hh, _ = x_ref.shape
    inv_h = 1.0 / hh

    # AdaptiveAvgPool2d((1, None)): mean over H.  Widening reduction fused with
    # the load -- no block-sized f32 temporary for bf16/fp8 inputs.
    pooled = jnp.sum(x_ref[...], axis=2, dtype=jnp.float32) * inv_h      # (NB, C, TW)

    # conv1 (1x1) with BatchNorm + bias folded in: y = w1' @ pooled + shift'
    w1b = jnp.broadcast_to(w1_ref[...], (nb,) + w1_ref.shape)            # (NB, M, C)
    y = jnp.einsum("nmc,ncw->nmw", w1b, pooled,
                   preferred_element_type=jnp.float32) + s1_ref[...][None]

    # h_swish: y * relu6(y + 3) / 6
    y = y * (jnp.clip(y + 3.0, 0.0, 6.0) * (1.0 / 6.0))

    # conv_w (1x1) + bias, then sigmoid
    w2b = jnp.broadcast_to(w2_ref[...], (nb,) + w2_ref.shape)            # (NB, C, M)
    z = jnp.einsum("ncm,nmw->ncw", w2b, y,
                   preferred_element_type=jnp.float32) + b2_ref[...][None]
    o_ref[...] = jax.nn.sigmoid(z).astype(o_ref.dtype)


def init_w_params(key, inp, reduction=32, dtype=jnp.float32):
    mip = max(8, inp // reduction)
    k = jax.random.split(key, 6)
    params = {
        # conv1: torch weight (mip, inp, 1, 1) -> stored transposed as (inp, mip)
        "w1": (jax.random.normal(k[0], (inp, mip), dtype) * 0.1),
        "b1": (jax.random.normal(k[1], (mip,), dtype) * 0.1),
        # BatchNorm2d(mip), inference-mode parameters / running stats
        "gamma": 1.0 + 0.1 * jax.random.normal(k[2], (mip,), dtype),
        "beta": 0.1 * jax.random.normal(k[3], (mip,), dtype),
        "running_mean": jnp.zeros((mip,), dtype),
        "running_var": jnp.ones((mip,), dtype),
        # conv_w: torch weight (inp, mip, 1, 1) -> stored transposed as (mip, inp)
        "w2": (jax.random.normal(k[4], (mip, inp), dtype) * 0.1),
        "b2": (jax.random.normal(k[5], (inp,), dtype) * 0.1),
    }
    return params, mip


def _vmem_capacity_bytes():
    try:
        return int(pltpu.get_tpu_info().vmem_capacity_bytes)
    except Exception:
        return 64 << 20        # conservative: v7x has the smallest VMEM


def _pick_tiles(n, c, h, w, itemsize, x_budget):
    """Choose (nb, tile_w) for (NB, C, H, TILE_W) input blocks.

    tile_w is a multiple of 128 (or the full W); the block is sized from a
    per-buffer byte budget (BlockSpec double-buffers it).  When a full-W slab
    is small, several batch samples are packed per block instead.
    """
    per_col = max(1, c * h * itemsize)
    full_w_bytes = per_col * w

    if full_w_bytes <= x_budget:
        # Small/medium W: batch samples per block so each DMA is a contiguous
        # multi-sample NCHW slab and per-step overhead is amortized.
        tile_w = w
        nb = max(1, min(n, x_budget // full_w_bytes))
        if n > 1:
            nb = min(nb, pl.cdiv(n, 2))      # keep >= 2 parallel blocks (megacore)
        return nb, tile_w

    # Large W: tile along the lane axis, sized purely from the byte budget.
    tw = max(128, (x_budget // per_col) // 128 * 128)
    # Keep contiguous runs >= ~2 KiB when splitting W (512 cols f32, 1024 bf16),
    # as long as that stays affordable.
    min_run_cols = max(128, pl.cdiv(2048, itemsize * 128) * 128)
    if min_run_cols * per_col <= 2 * x_budget:
        tw = max(tw, min_run_cols)
    return 1, min(tw, w)


def w_forward(x, params, eps=1e-5):
    """x: (N, C, H, W) -> a_w: (N, C, 1, W). Inference-mode BatchNorm."""
    n, c, h, w = x.shape
    mip = params["w1"].shape[1]
    itemsize = x.dtype.itemsize

    # Fold BN (inference) and the conv1 bias into the conv1 weights (host side).
    scale = params["gamma"] / jnp.sqrt(params["running_var"] + eps)      # (M,)
    shift = params["beta"] - params["running_mean"] * scale              # (M,)
    w1_k = (params["w1"] * scale[None, :]).T.astype(jnp.float32)         # (M, C)
    s1_k = (params["b1"] * scale + shift).astype(jnp.float32)[:, None]   # (M, 1)
    w2_k = params["w2"].T.astype(jnp.float32)                            # (C, M)
    b2_k = params["b2"].astype(jnp.float32)[:, None]                     # (C, 1)

    vmem_cap = _vmem_capacity_bytes()
    x_budget = min(8 << 20, vmem_cap // 8)      # per x buffer (double-buffered)
    nb, tile_w = _pick_tiles(n, c, h, w, itemsize, x_budget)

    grid = (pl.cdiv(n, nb), pl.cdiv(w, tile_w))
    # Keep at least 2 parallel blocks when possible so v7x's second TC has work.
    if grid[0] * grid[1] == 1 and w >= 256:
        tile_w = pl.cdiv(pl.cdiv(w, 2), 128) * 128
        grid = (pl.cdiv(n, nb), pl.cdiv(w, tile_w))

    # VMEM budget from the actual block bytes (x and out are double-buffered).
    x_block = nb * c * h * tile_w * itemsize
    out_block = nb * c * tile_w * itemsize
    f32_tmp = nb * (2 * c + 2 * mip) * tile_w * 4
    wgt_bytes = (2 * mip * c + mip + c) * 4
    need = 2 * x_block + 2 * out_block + f32_tmp + wgt_bytes
    vmem_limit = int(min(max(int(need * 1.5), 16 << 20),
                         max(vmem_cap - (8 << 20), 16 << 20)))

    cost = pl.CostEstimate(
        flops=int(n * c * h * w + 4 * n * mip * c * w + 6 * n * (mip + c) * w),
        transcendentals=int(n * (mip + c) * w),
        bytes_accessed=int(n * c * h * w * itemsize + n * c * w * itemsize
                           + wgt_bytes),
    )

    out = pl.pallas_call(
        _w_kernel,
        out_shape=jax.ShapeDtypeStruct((n, c, w), x.dtype),
        grid=grid,
        in_specs=[
            pl.BlockSpec((nb, c, h, tile_w), lambda ni, wi: (ni, 0, 0, wi)),  # x
            pl.BlockSpec((mip, c), lambda ni, wi: (0, 0)),                    # w1' (BN folded)
            pl.BlockSpec((mip, 1), lambda ni, wi: (0, 0)),                    # shift'
            pl.BlockSpec((c, mip), lambda ni, wi: (0, 0)),                    # w2
            pl.BlockSpec((c, 1), lambda ni, wi: (0, 0)),                      # b2
        ],
        out_specs=pl.BlockSpec((nb, c, tile_w), lambda ni, wi: (ni, 0, wi)),
        compiler_params=pltpu.CompilerParams(
            dimension_semantics=("parallel", "parallel"),
            vmem_limit_bytes=vmem_limit),
        cost_estimate=cost,
    )(x, w1_k, s1_k, w2_k, b2_k)

    # (N, C, W) -> (N, C, 1, W): pure reshape, no transpose / extra HBM pass.
    return out[:, :, None, :]


def w_forward_reference(x, params, eps=1e-5):
    """Pure-JAX reference mirroring the PyTorch forward (inference-mode BN)."""
    pooled = jnp.mean(x, axis=2, keepdims=True)                    # (N, C, 1, W)
    y = jnp.einsum("nchw,cm->nmhw", pooled, params["w1"]) + params["b1"][None, :, None, None]
    scale = params["gamma"] / jnp.sqrt(params["running_var"] + eps)
    shift = params["beta"] - params["running_mean"] * scale
    y = y * scale[None, :, None, None] + shift[None, :, None, None]
    y = y * jnp.clip(y + 3.0, 0.0, 6.0) / 6.0
    z = jnp.einsum("nmhw,mc->nchw", y, params["w2"]) + params["b2"][None, :, None, None]
    return jax.nn.sigmoid(z)


if __name__ == "__main__":
    key = jax.random.PRNGKey(0)
    k_x, k_p = jax.random.split(key)

    # Small shapes consistent with the module: inp=4 -> mip = max(8, 4//32) = 8
    N, C, H, W = 2, 4, 16, 16
    x = jax.random.normal(k_x, (N, C, H, W), jnp.float32)

    params, mip = init_w_params(k_p, inp=C, reduction=32)

    a_w = w_forward(x, params)
    a_w = jax.block_until_ready(a_w)

    ref = w_forward_reference(x, params)
    assert a_w.shape == (N, C, 1, W), a_w.shape
    assert jnp.allclose(a_w, ref, atol=1e-5, rtol=1e-5), float(jnp.max(jnp.abs(a_w - ref)))

    print("KERNEL_OK")
</pallas_src>

<mosaic_0001>
module attributes {stable_mosaic.version = 11 : i64} {
  func.func @_w_kernel(%arg0: i32, %arg1: i32, %arg2: memref<1x4x16x16xf32, #tpu.memory_space<vmem>>, %arg3: memref<8x4xf32, #tpu.memory_space<vmem>>, %arg4: memref<8x1xf32, #tpu.memory_space<vmem>>, %arg5: memref<4x8xf32, #tpu.memory_space<vmem>>, %arg6: memref<4x1xf32, #tpu.memory_space<vmem>>, %arg7: memref<1x4x16xf32, #tpu.memory_space<vmem>>) attributes {dimension_semantics = [#tpu.dimension_semantics<parallel>, #tpu.dimension_semantics<parallel>], iteration_bounds = array<i64: 2, 1>, scalar_prefetch = 0 : i64, scratch_operands = 0 : i64, tpu.core_type = #tpu.core_type<tc>, window_params = [{transform_indices = @transform_0, window_bounds = array<i64: 1, 4, 16, 16>}, {pipeline_mode = #tpu.pipeline_mode<synchronous>, transform_indices = @transform_1, window_bounds = array<i64: 8, 4>}, {pipeline_mode = #tpu.pipeline_mode<synchronous>, transform_indices = @transform_2, window_bounds = array<i64: 8, 1>}, {pipeline_mode = #tpu.pipeline_mode<synchronous>, transform_indices = @transform_3, window_bounds = array<i64: 4, 8>}, {pipeline_mode = #tpu.pipeline_mode<synchronous>, transform_indices = @transform_4, window_bounds = array<i64: 4, 1>}, {transform_indices = @transform_5, window_bounds = array<i64: 1, 4, 16>}]} {
    %c0 = arith.constant 0 : index
    %c0_0 = arith.constant 0 : index
    %c0_1 = arith.constant 0 : index
    %c0_2 = arith.constant 0 : index
    %0 = vector.load %arg2[%c0, %c0_0, %c0_1, %c0_2] : memref<1x4x16x16xf32, #tpu.memory_space<vmem>>, vector<1x4x16x16xf32>
    %cst = arith.constant dense<0.000000e+00> : vector<1x4x16xf32>
    %1 = vector.multi_reduction <add>, %0, %cst [2] : vector<1x4x16x16xf32> to vector<1x4x16xf32>
    %cst_3 = arith.constant 6.250000e-02 : f32
    %2 = vector.broadcast %cst_3 : f32 to vector<1x4x16xf32>
    %3 = arith.mulf %1, %2 : vector<1x4x16xf32>
    %c0_4 = arith.constant 0 : index
    %c0_5 = arith.constant 0 : index
    %4 = vector.load %arg3[%c0_4, %c0_5] : memref<8x4xf32, #tpu.memory_space<vmem>>, vector<8x4xf32>
    %5 = vector.shape_cast %4 : vector<8x4xf32> to vector<1x8x4xf32>
    "tpu.trace_start"() <{level = 10 : i32, message = "nmc,ncw->nmw"}> : () -> ()
    %cst_6 = arith.constant dense<0.000000e+00> : vector<1x8x16xf32>
    %6 = tpu.matmul %5, %3, %cst_6 {dimension_numbers = #tpu.dot_dimension_numbers<[2], [1], [1], [2], [0, 0, 0, 1, 1, 2], [0], [0]>} : vector<1x8x4xf32>, vector<1x4x16xf32>, vector<1x8x16xf32> -> vector<1x8x16xf32>
    "tpu.trace_stop"() : () -> ()
    %c0_7 = arith.constant 0 : index
    %c0_8 = arith.constant 0 : index
    %7 = vector.load %arg4[%c0_7, %c0_8] : memref<8x1xf32, #tpu.memory_space<vmem>>, vector<8x1xf32>
    %8 = vector.shape_cast %7 : vector<8x1xf32> to vector<1x8x1xf32>
    %9 = vector.broadcast %8 : vector<1x8x1xf32> to vector<1x8x16xf32>
    %10 = arith.addf %6, %9 : vector<1x8x16xf32>
    %cst_9 = arith.constant 3.000000e+00 : f32
    %11 = vector.broadcast %cst_9 : f32 to vector<1x8x16xf32>
    %12 = arith.addf %10, %11 : vector<1x8x16xf32>
    %cst_10 = arith.constant 0.000000e+00 : f32
    %cst_11 = arith.constant 6.000000e+00 : f32
    %13 = vector.broadcast %cst_10 : f32 to vector<1x8x16xf32>
    %14 = arith.maximumf %13, %12 : vector<1x8x16xf32>
    %15 = vector.broadcast %cst_11 : f32 to vector<1x8x16xf32>
    %16 = arith.minimumf %15, %14 : vector<1x8x16xf32>
    %cst_12 = arith.constant 0.166666672 : f32
    %17 = vector.broadcast %cst_12 : f32 to vector<1x8x16xf32>
    %18 = arith.mulf %16, %17 : vector<1x8x16xf32>
    %19 = arith.mulf %10, %18 : vector<1x8x16xf32>
    %c0_13 = arith.constant 0 : index
    %c0_14 = arith.constant 0 : index
    %20 = vector.load %arg5[%c0_13, %c0_14] : memref<4x8xf32, #tpu.memory_space<vmem>>, vector<4x8xf32>
    %21 = vector.shape_cast %20 : vector<4x8xf32> to vector<1x4x8xf32>
    "tpu.trace_start"() <{level = 10 : i32, message = "ncm,nmw->ncw"}> : () -> ()
    %cst_15 = arith.constant dense<0.000000e+00> : vector<1x4x16xf32>
    %22 = tpu.matmul %21, %19, %cst_15 {dimension_numbers = #tpu.dot_dimension_numbers<[2], [1], [1], [2], [0, 0, 0, 1, 1, 2], [0], [0]>} : vector<1x4x8xf32>, vector<1x8x16xf32>, vector<1x4x16xf32> -> vector<1x4x16xf32>
    "tpu.trace_stop"() : () -> ()
    %c0_16 = arith.constant 0 : index
    %c0_17 = arith.constant 0 : index
    %23 = vector.load %arg6[%c0_16, %c0_17] : memref<4x1xf32, #tpu.memory_space<vmem>>, vector<4x1xf32>
    %24 = vector.shape_cast %23 : vector<4x1xf32> to vector<1x4x1xf32>
    %25 = vector.broadcast %24 : vector<1x4x1xf32> to vector<1x4x16xf32>
    %26 = arith.addf %22, %25 : vector<1x4x16xf32>
    %27 = arith.negf %26 : vector<1x4x16xf32>
    %28 = math.exp %27 : vector<1x4x16xf32>
    %cst_18 = arith.constant 1.000000e+00 : f32
    %29 = vector.broadcast %cst_18 : f32 to vector<1x4x16xf32>
    %30 = arith.addf %29, %28 : vector<1x4x16xf32>
    %31 = arith.divf %29, %30 : vector<1x4x16xf32>
    %c0_19 = arith.constant 0 : index
    %c0_20 = arith.constant 0 : index
    %c0_21 = arith.constant 0 : index
    %32 = vector.load %arg7[%c0_19, %c0_20, %c0_21] : memref<1x4x16xf32, #tpu.memory_space<vmem>>, vector<1x4x16xf32>
    tpu.vector_store %arg7[%c0_19, %c0_20, %c0_21], %31 {strides = array<i32>} : memref<1x4x16xf32, #tpu.memory_space<vmem>>, vector<1x4x16xf32>,
    return
  }
  func.func @transform_0(%arg0: i32, %arg1: i32) -> (i32, i32, i32, i32) {
    %c0_i32 = arith.constant 0 : i32
    %c0_i32_0 = arith.constant 0 : i32
    %c0_i32_1 = arith.constant 0 : i32
    return %arg0, %c0_i32, %c0_i32_0, %arg1 : i32, i32, i32, i32
  }
  func.func @transform_1(%arg0: i32, %arg1: i32) -> (i32, i32) {
    %c0_i32 = arith.constant 0 : i32
    %c0_i32_0 = arith.constant 0 : i32
    %c0_i32_1 = arith.constant 0 : i32
    return %c0_i32, %c0_i32_0 : i32, i32
  }
  func.func @transform_2(%arg0: i32, %arg1: i32) -> (i32, i32) {
    %c0_i32 = arith.constant 0 : i32
    %c0_i32_0 = arith.constant 0 : i32
    %c0_i32_1 = arith.constant 0 : i32
    return %c0_i32, %c0_i32_0 : i32, i32
  }
  func.func @transform_3(%arg0: i32, %arg1: i32) -> (i32, i32) {
    %c0_i32 = arith.constant 0 : i32
    %c0_i32_0 = arith.constant 0 : i32
    %c0_i32_1 = arith.constant 0 : i32
    return %c0_i32, %c0_i32_0 : i32, i32
  }
  func.func @transform_4(%arg0: i32, %arg1: i32) -> (i32, i32) {
    %c0_i32 = arith.constant 0 : i32
    %c0_i32_0 = arith.constant 0 : i32
    %c0_i32_1 = arith.constant 0 : i32
    return %c0_i32, %c0_i32_0 : i32, i32
  }
  func.func @transform_5(%arg0: i32, %arg1: i32) -> (i32, i32, i32) {
    %c0_i32 = arith.constant 0 : i32
    %c0_i32_0 = arith.constant 0 : i32
    return %arg0, %c0_i32, %arg1 : i32, i32, i32
  }
}

</mosaic_0001>

<llo_original>
// kernel: tpu_custom_call.1
$region0: #{tpu_custom_call.1}
  #allocation0 [shape = 'u32[]', space=smem, size = 0x4, offset = 0x4, fixed_abs, tag = 'smem constant byte address 0x4 - core index']
  #allocation1 [shape = 'u32[144,128]{1,0:T(1,128)}', space=vmem, size = 0x12000, scoped, tag = 'internal scratch']
  %s0 = inlined_call_operand.hbm [shape: f32[2,4,16,16], index: 0, kind: input, shape index: {}]
  %s1 = inlined_call_operand.vmem [shape: f32[8,4], index: 1, kind: input, shape index: {}]
  %s2 = inlined_call_operand.vmem [shape: f32[8,1], index: 2, kind: input, shape index: {}]
  %s3 = inlined_call_operand.vmem [shape: f32[4,8], index: 3, kind: input, shape index: {}]
  %s4 = inlined_call_operand.vmem [shape: f32[4,1], index: 4, kind: input, shape index: {}]
  %s5 = inlined_call_operand.hbm [shape: f32[2,4,16], index: 5, kind: output, shape index: {}]
  %s6 = sld [smem:[#allocation0]]
  $region57: #{tpu_custom_call.1} parent=0
    _
  %s8 = ssub.s32 1, %s6
  %s9 = scalar_select 0, %s8, %s6
  $region1: #{tpu_custom_call.1} parent=0
    #allocation2 [shape = 'u8[65536]{0}', space=vmem, size = 0x10000, scoped, tag = 'input window, operand 0']
    #allocation3 [shape = 's32[2]{0}', space=sflag, size = 0x8, scoped, tag = 'scoped memory for tpu_custom_call.1']
    #allocation4 [shape = 's32[2]{0}', space=sflag, size = 0x8, scoped, tag = 'scoped memory for tpu_custom_call.1']
    #allocation5 [shape = 'u8[4096]{0}', space=vmem, size = 0x1000, scoped, tag = 'output window, operand 0']
    %10 = vsyncpa [#allocation3], 0
    %s11 = scalar_lea.sflag [#allocation3], 1
    %12 = vsyncpa %s11, 0
    %13 = vsyncpa [#allocation4], 0
    %s14 = scalar_lea.sflag [#allocation4], 1
    %15 = vsyncpa %s14, 0
    loop: start=0, step=1, limit=4
    $region2: #{tpu_custom_call.1} parent=1 // loop_pre_header
      _
    $region3: #{tpu_custom_call.1} parent=1 // loop_header
      %s17 = sphi 0, %s21
      %p18 = scmp.ge.s32.totalorder %s17, 4
      %s24 = sphi 0, %s36
      %s25 = sphi 0, %s32
      %s26 = sphi 0, %s24
      %s27 = sphi 0, %s25
      %s28 = sphi 0, %s26
      %s29 = sphi 0, %s27
      %s41 = sphi 0, %s43
      %s44 = sphi 0, %s41
      %s45 = sphi 0, %s44
      %s61 = sphi 0, %s45
      %s65 = sphi 0, %s65
      %s67 = sphi 0, %s65
      %s68 = sphi 0, %s67
      %s82 = sphi 0, %s68
      %s86 = sphi 0, %s86
      %s88 = sphi 0, %s86
      %s89 = sphi 0, %s88
      %s103 = sphi 0, %s89
      %s107 = sphi 0, %s107
      %s109 = sphi 0, %s107
      %s110 = sphi 0, %s109
      %s124 = sphi 0, %s110
      %s128 = sphi 0, %s128
      %s130 = sphi 0, %s128
      %s131 = sphi 0, %s130
      %s145 = sphi 0, %s131
      %s153 = sphi 0, %s155
      %s156 = sphi 0, %s153
      %s157 = sphi 0, %s156
      %s173 = sphi 0, %s157
    $region4: #{tpu_custom_call.1} parent=1 // loop_header_branch
      %20 = sbr.rel (%p18) target = $region8
    $region5: #{tpu_custom_call.1} parent=1 // loop_body
      %s22 = ssub.s32 %s17, 1
      %s23 = ssub.s32 %s17, 2
      %s30 = sadd.s32 1, %s25
      %p31 = scmp.ge.s32.totalorder %s30, 1
      %s32 = scalar_select %p31, 0, %s30
      %s33 = sadd.s32 1, %s24
      %s34 = scalar_select %p31, %s33, %s24
      %p35 = scmp.ge.s32.totalorder %s34, 2
      %s36 = scalar_select %p35, 0, %s34
      %s37 = ssub.s32 %s24, %s36
      %s38 = ssub.s32 %s25, %s32
      %s39 = sor.u32 %s37, %s38
      %p40 = scmp.eq.s32.totalorder %s39, 0
      %s42 = sadd.s32 %s41, 1
      %s43 = scalar_select %p40, %s41, %s42
      %p46 = pneg %p40
      %p47 = scmp.eq.s32.totalorder %s17, 1
      %p48 = por %p46, %p47
      %p49 = scmp.ne.s32.totalorder %s41, %s44
      %p50 = scmp.eq.s32.totalorder %s17, 0
      %p51 = por %p49, %p50
      %p52 = scmp.ne.s32.totalorder %s41, %s44
      %p53 = scmp.eq.s32.totalorder %s22, 1
      %p54 = por %p52, %p53
      %p55 = scmp.ne.s32.totalorder %s44, %s45
      %p56 = scmp.eq.s32.totalorder %s22, 0
      %p57 = por %p55, %p56
      %p58 = scmp.ne.s32.totalorder %s44, %s45
      %p59 = scmp.eq.s32.totalorder %s23, 1
      %p60 = por %p58, %p59
      %p62 = scmp.ne.s32.totalorder %s45, %s61
      %p63 = scmp.eq.s32.totalorder %s23, 0
      %p64 = por %p62, %p63
      %s66 = sadd.s32 %s65, 1
      %p69 = scmp.eq.s32.totalorder %s17, 1
      %p70 = scmp.ne.s32.totalorder %s65, %s67
      %p71 = scmp.eq.s32.totalorder %s17, 0
      %p72 = por %p70, %p71
      %p73 = scmp.ne.s32.totalorder %s65, %s67
      %p74 = scmp.eq.s32.totalorder %s22, 1
      %p75 = por %p73, %p74
      %p76 = scmp.ne.s32.totalorder %s67, %s68
      %p77 = scmp.eq.s32.totalorder %s22, 0
      %p78 = por %p76, %p77
      %p79 = scmp.ne.s32.totalorder %s67, %s68
      %p80 = scmp.eq.s32.totalorder %s23, 1
      %p81 = por %p79, %p80
      %p83 = scmp.ne.s32.totalorder %s68, %s82
      %p84 = scmp.eq.s32.totalorder %s23, 0
      %p85 = por %p83, %p84
      %s87 = sadd.s32 %s86, 1
      %p90 = scmp.eq.s32.totalorder %s17, 1
      %p91 = scmp.ne.s32.totalorder %s86, %s88
      %p92 = scmp.eq.s32.totalorder %s17, 0
      %p93 = por %p91, %p92
      %p94 = scmp.ne.s32.totalorder %s86, %s88
      %p95 = scmp.eq.s32.totalorder %s22, 1
      %p96 = por %p94, %p95
      %p97 = scmp.ne.s32.totalorder %s88, %s89
      %p98 = scmp.eq.s32.totalorder %s22, 0
      %p99 = por %p97, %p98
      %p100 = scmp.ne.s32.totalorder %s88, %s89
      %p101 = scmp.eq.s32.totalorder %s23, 1
      %p102 = por %p100, %p101
      %p104 = scmp.ne.s32.totalorder %s89, %s103
      %p105 = scmp.eq.s32.totalorder %s23, 0
      %p106 = por %p104, %p105
      %s108 = sadd.s32 %s107, 1
      %p111 = scmp.eq.s32.totalorder %s17, 1
      %p112 = scmp.ne.s32.totalorder %s107, %s109
      %p113 = scmp.eq.s32.totalorder %s17, 0
      %p114 = por %p112, %p113
      %p115 = scmp.ne.s32.totalorder %s107, %s109
      %p116 = scmp.eq.s32.totalorder %s22, 1
      %p117 = por %p115, %p116
      %p118 = scmp.ne.s32.totalorder %s109, %s110
      %p119 = scmp.eq.s32.totalorder %s22, 0
      %p120 = por %p118, %p119
      %p121 = scmp.ne.s32.totalorder %s109, %s110
      %p122 = scmp.eq.s32.totalorder %s23, 1
      %p123 = por %p121, %p122
      %p125 = scmp.ne.s32.totalorder %s110, %s124
      %p126 = scmp.eq.s32.totalorder %s23, 0
      %p127 = por %p125, %p126
      %s129 = sadd.s32 %s128, 1
      %p132 = scmp.eq.s32.totalorder %s17, 1
      %p133 = scmp.ne.s32.totalorder %s128, %s130
      %p134 = scmp.eq.s32.totalorder %s17, 0
      %p135 = por %p133, %p134
      %p136 = scmp.ne.s32.totalorder %s128, %s130
      %p137 = scmp.eq.s32.totalorder %s22, 1
      %p138 = por %p136, %p137
      %p139 = scmp.ne.s32.totalorder %s130, %s131
      %p140 = scmp.eq.s32.totalorder %s22, 0
      %p141 = por %p139, %p140
      %p142 = scmp.ne.s32.totalorder %s130, %s131
      %p143 = scmp.eq.s32.totalorder %s23, 1
      %p144 = por %p142, %p143
      %p146 = scmp.ne.s32.totalorder %s131, %s145
      %p147 = scmp.eq.s32.totalorder %s23, 0
      %p148 = por %p146, %p147
      %s149 = ssub.s32 %s24, %s36
      %s150 = ssub.s32 %s25, %s32
      %s151 = sor.u32 %s149, %s150
      %p152 = scmp.eq.s32.totalorder %s151, 0
      %s154 = sadd.s32 %s153, 1
      %s155 = scalar_select %p152, %s153, %s154
      %p158 = pneg %p152
      %p159 = scmp.eq.s32.totalorder %s17, 1
      %p160 = por %p158, %p159
      %p161 = scmp.ne.s32.totalorder %s153, %s156
      %p162 = scmp.eq.s32.totalorder %s17, 0
      %p163 = por %p161, %p162
      %p164 = scmp.ne.s32.totalorder %s153, %s156
      %p165 = scmp.eq.s32.totalorder %s22, 1
      %p166 = por %p164, %p165
      %p167 = scmp.ne.s32.totalorder %s156, %s157
      %p168 = scmp.eq.s32.totalorder %s22, 0
      %p169 = por %p167, %p168
      %p170 = scmp.ne.s32.totalorder %s156, %s157
      %p171 = scmp.eq.s32.totalorder %s23, 1
      %p172 = por %p170, %p171
      %p174 = scmp.ne.s32.totalorder %s157, %s173
      %p175 = scmp.eq.s32.totalorder %s23, 0
      %p176 = por %p174, %p175
      %p177 = scmp.le.s32.totalorder 1, %s17
      %p178 = scmp.lt.s32.totalorder %s17, 3
      %p179 = pnand %p177, %p178
      %p180 = pneg %p179
      // Predicated region
      $region9: #{tpu_custom_call.1} parent=5 // pred_check
        _
      $region10: #{tpu_custom_call.1} parent=5 // pred_check_branch
        %182 = sbr.rel (%p179) target = $region12
      $region11: #{tpu_custom_call.1} parent=5 // pred_region
        %s183 = ssub.s32 %s17, 1
        // Predicated region
        $region13: #{tpu_custom_call.1} parent=11 // pred_check
          %p184 = pneg %p78
        $region14: #{tpu_custom_call.1} parent=11 // pred_check_branch
          %186 = sbr.rel (%p184) target = $region16
        $region15: #{tpu_custom_call.1} parent=11 // pred_region
          _
        $region16: #{tpu_custom_call.1} parent=11 // pred_fallthru
          _
        // Predicated region
        $region17: #{tpu_custom_call.1} parent=11 // pred_check
          %p187 = pneg %p99
        $region18: #{tpu_custom_call.1} parent=11 // pred_check_branch
          %189 = sbr.rel (%p187) target = $region20
        $region19: #{tpu_custom_call.1} parent=11 // pred_region
          _
        $region20: #{tpu_custom_call.1} parent=11 // pred_fallthru
          _
        // Predicated region
        $region21: #{tpu_custom_call.1} parent=11 // pred_check
          %p190 = pneg %p120
        $region22: #{tpu_custom_call.1} parent=11 // pred_check_branch
          %192 = sbr.rel (%p190) target = $region24
        $region23: #{tpu_custom_call.1} parent=11 // pred_region
          _
        $region24: #{tpu_custom_call.1} parent=11 // pred_fallthru
          _
        // Predicated region
        $region25: #{tpu_custom_call.1} parent=11 // pred_check
          %p193 = pneg %p141
        $region26: #{tpu_custom_call.1} parent=11 // pred_check_branch
          %195 = sbr.rel (%p193) target = $region28
        $region27: #{tpu_custom_call.1} parent=11 // pred_region
          _
        $region28: #{tpu_custom_call.1} parent=11 // pred_fallthru
          _
      $region12: #{tpu_custom_call.1} parent=5 // pred_fallthru
        _
      %p196 = scmp.lt.s32.totalorder %s17, 2
      // Predicated region
      $region29: #{tpu_custom_call.1} parent=5 // pred_check
        %p197 = pneg %p196
      $region30: #{tpu_custom_call.1} parent=5 // pred_check_branch
        %199 = sbr.rel (%p197) target = $region32
      $region31: #{tpu_custom_call.1} parent=5 // pred_region
        // Predicated region
        $region33: #{tpu_custom_call.1} parent=31 // pred_check
          %p200 = pneg %p51
        $region34: #{tpu_custom_call.1} parent=31 // pred_check_branch
          %202 = sbr.rel (%p200) target = $region36
        $region35: #{tpu_custom_call.1} parent=31 // pred_region
          %s203 = sand.u32 %s41, 1
          %s204 = scalar_lea.sflag [#allocation3], %s203
          %s205 = sand.u32 %s41, 1
          %s206 = smul.addr %s205, 64
          %s207 = scalar_lea.vmem [#allocation2], %s206
          %s209 = ssub.s32 1024, 1024
          %210 = vsyncadd %s204, %s209
          %s211 = smul.addr %s24, 8
          %s212 = sadd.s32 %s25, %s211
          %s213 = smul.addr %s212, 128
          %s214 = scalar_lea.hbm %s0, %s213
          %s215 = sshll.u32 %s207, 4
          %s216 = int_to_ptr.vmem [resolvable:$true] %s215
          %221 = dma.hbm_to_vmem [thread:$0]  %s214, 1024, %s216, %s204, 128, 128, 8
        $region36: #{tpu_custom_call.1} parent=31 // pred_fallthru
          _
      $region32: #{tpu_custom_call.1} parent=5 // pred_fallthru
        _
      %p222 = scmp.le.s32.totalorder 1, %s17
      %p223 = scmp.lt.s32.totalorder %s17, 3
      %p224 = pnand %p222, %p223
      %p225 = pneg %p224
      // Predicated region
      $region37: #{tpu_custom_call.1} parent=5 // pred_check
        _
      $region38: #{tpu_custom_call.1} parent=5 // pred_check_branch
        %227 = sbr.rel (%p224) target = $region40
      $region39: #{tpu_custom_call.1} parent=5 // pred_region
        %s228 = ssub.s32 %s17, 1
        %s229 = sand.u32 %s44, 1
        %s230 = scalar_lea.sflag [#allocation3], %s229
        %s231 = sand.u32 %s44, 1
        %s232 = smul.addr %s231, 64
        %s233 = scalar_lea.vmem [#allocation2], %s232
        // Predicated region
        $region41: #{tpu_custom_call.1} parent=39 // pred_check
          %p234 = pneg %p57
        $region42: #{tpu_custom_call.1} parent=39 // pred_check_branch
          %236 = sbr.rel (%p234) target = $region44
        $region43: #{tpu_custom_call.1} parent=39 // pred_region
          %237 = dma.done %s230, 1024
        $region44: #{tpu_custom_call.1} parent=39 // pred_fallthru
          _
        %s238 = sand.u32 %s44, 1
        %s239 = scalar_lea.sflag [#allocation3], %s238
        %s240 = sand.u32 %s44, 1
        %s241 = smul.addr %s240, 64
        %s242 = scalar_lea.vmem [#allocation2], %s241
        %p243 = pneg %p57
        %p244 = pneg %p54
        %p245 = pneg %p78
        %p246 = pneg %p75
        %p247 = pneg %p99
        %p248 = pneg %p96
        %p249 = pneg %p120
        %p250 = pneg %p117
        %p251 = pneg %p141
        %p252 = pneg %p138
        %p253 = pneg %p169
        %p254 = pneg %p166
        %s255 = sand.u32 %s156, 1
        %s256 = scalar_lea.sflag [#allocation4], %s255
        %s257 = sand.u32 %s156, 1
        %s258 = smul.addr %s257, 4
        %s259 = scalar_lea.vmem [#allocation5], %s258
        %v260 = vld [vmem:[%s233] sm:$0xff]
        %v261 = vld [vmem:[%s233 + $0x8] sm:$0xff]
        %v262 = vld [vmem:[%s233 + $0x10] sm:$0xff]
        %v263 = vld [vmem:[%s233 + $0x18] sm:$0xff]
        %v264 = vld [vmem:[%s233 + $0x20] sm:$0xff]
        %v265 = vld [vmem:[%s233 + $0x28] sm:$0xff]
        %v266 = vld [vmem:[%s233 + $0x30] sm:$0xff]
        %v267 = vld [vmem:[%s233 + $0x38] sm:$0xff]
        %vm268 = vcmask 130048
        %v269 = vsel %vm268, %v260, 0.0
        %v270 = vsel %vm268, %v261, 0.0
        %v271 = vadd.f32 %v269, %v270
        %v272 = vrot.slane %v271, 4
        %v273 = vadd.f32 %v271, %v272
        %v274 = vrot.slane %v273, 2
        %v275 = vadd.f32 %v273, %v274
        %v276 = vrot.slane %v275, 1
        %v277 = vadd.f32 %v275, %v276
        %v278 = vsel %vm268, %v262, 0.0
        %v279 = vsel %vm268, %v263, 0.0
        %v280 = vadd.f32 %v278, %v279
        %v281 = vrot.slane %v280, 4
        %v282 = vadd.f32 %v280, %v281
        %v283 = vrot.slane %v282, 2
        %v284 = vadd.f32 %v282, %v283
        %v285 = vrot.slane %v284, 1
        %v286 = vadd.f32 %v284, %v285
        %v287 = vsel %vm268, %v264, 0.0
        %v288 = vsel %vm268, %v265, 0.0
        %v289 = vadd.f32 %v287, %v288
        %v290 = vrot.slane %v289, 4
        %v291 = vadd.f32 %v289, %v290
        %v292 = vrot.slane %v291, 2
        %v293 = vadd.f32 %v291, %v292
        %v294 = vrot.slane %v293, 1
        %v295 = vadd.f32 %v293, %v294
        %v296 = vsel %vm268, %v266, 0.0
        %v297 = vsel %vm268, %v267, 0.0
        %v298 = vadd.f32 %v296, %v297
        %v299 = vrot.slane %v298, 4
        %v300 = vadd.f32 %v298, %v299
        %v301 = vrot.slane %v300, 2
        %v302 = vadd.f32 %v300, %v301
        %v303 = vrot.slane %v302, 1
        %v304 = vadd.f32 %v302, %v303
        %v305 = vmul.f32 %v277, 0.0625
        %v306 = vmul.f32 %v286, 0.0625
        %v307 = vmul.f32 %v295, 0.0625
        %v308 = vmul.f32 %v304, 0.0625
        %v309 = vld [vmem:[%s1] sm:$0xff]
        %v310 = vld [vmem:[%s2] sm:$0xff]
        %312 = vset.pattern.permute.xlu0 0
        %313 = vperm.xlu0 %312, %v310
        %v314 = vpop.permute.xlu0 %313
        %vm320 = vcmask 1041409
        %v321 = vsel %vm320, %v306, %v305
        %vm322 = vcmask 1042434
        %v323 = vsel %vm322, %v307, %v321
        %vm324 = vcmask 1043459
        %v325 = vsel %vm324, %v308, %v323
        %vm326 = vcmask 31744
        %v328 = vsel %vm326, %v309, 0
        %vm330 = vcmask 1043456
        %v331 = vsel %vm330, %v325, 0
        %333 = vmatprep.subr.mxu0 0.0
        %334 = vmatpush1.msra.mxu0 0.0
        %335 = vmatprep.subr.mxu0 0.0
        %336 = vmatpush1.msra.mxu0 0.0
        %337 = vmatprep.subr.mxu0 0.0
        %338 = vmatpush1.msra.mxu0 0.0
        %339 = vmatprep.subr.mxu0 0.0
        %340 = vmatpush1.msra.mxu0 0.0
        %341 = vmatprep.subr.mxu0 0.0
        %342 = vmatpush1.msra.mxu0 0.0
        %343 = vmatprep.subr.mxu0 0.0
        %344 = vmatpush1.msra.mxu0 0.0
        %345 = vmatprep.subr.mxu0 0.0
        %346 = vmatpush1.msra.mxu0 0.0
        %347 = vmatprep.subr.mxu0 0.0
        %348 = vmatpush1.msra.mxu0 0.0
        %349 = vmatprep.subr.mxu0 0.0
        %350 = vmatpush1.msra.mxu0 0.0
        %351 = vmatprep.subr.mxu0 0.0
        %352 = vmatpush1.msra.mxu0 0.0
        %353 = vmatprep.subr.mxu0 0.0
        %354 = vmatpush1.msra.mxu0 0.0
        %355 = vmatprep.subr.mxu0 0.0
        %356 = vmatpush1.msra.mxu0 0.0
        %357 = vmatprep.subr.mxu0 0.0
        %358 = vmatpush1.msra.mxu0 0.0
        %359 = vmatprep.subr.mxu0 0.0
        %360 = vmatpush1.msra.mxu0 0.0
        %361 = vmatprep.subr.mxu0 0.0
        %362 = vmatpush1.msra.mxu0 0.0
        %363 = vmatprep.subr.mxu0 0.0
        %364 = vmatpush1.msra.mxu0 %v331
        %365 = vmatprep.subr.mxu0 0.0
        %366 = vmatpush2.msra.mxu0 0.0
        %367 = vmatprep.subr.mxu0 0.0
        %368 = vmatpush2.msra.mxu0 0.0
        %369 = vmatprep.subr.mxu0 0.0
        %370 = vmatpush2.msra.mxu0 0.0
        %371 = vmatprep.subr.mxu0 0.0
        %372 = vmatpush2.msra.mxu0 0.0
        %373 = vmatprep.subr.mxu0 0.0
        %374 = vmatpush2.msra.mxu0 0.0
        %375 = vmatprep.subr.mxu0 0.0
        %376 = vmatpush2.msra.mxu0 0.0
        %377 = vmatprep.subr.mxu0 0.0
        %378 = vmatpush2.msra.mxu0 0.0
        %379 = vmatprep.subr.mxu0 0.0
        %380 = vmatpush2.msra.mxu0 0.0
        %381 = vmatprep.subr.mxu0 0.0
        %382 = vmatpush2.msra.mxu0 0.0
        %383 = vmatprep.subr.mxu0 0.0
        %384 = vmatpush2.msra.mxu0 0.0
        %385 = vmatprep.subr.mxu0 0.0
        %386 = vmatpush2.msra.mxu0 0.0
        %387 = vmatprep.subr.mxu0 0.0
        %388 = vmatpush2.msra.mxu0 0.0
        %389 = vmatprep.subr.mxu0 0.0
        %390 = vmatpush2.msra.mxu0 0.0
        %391 = vmatprep.subr.mxu0 0.0
        %392 = vmatpush2.msra.mxu0 0.0
        %393 = vmatprep.subr.mxu0 0.0
        %394 = vmatpush2.msra.mxu0 0.0
        %395 = vmatprep.subr.mxu0 0.0
        %396 = vmatpush2.msra.mxu0 0.0
        %397 = vmatprep.mubr.f32.mxu0 0.0
        %398 = vmatmul.mubr.f32.gmra.mxu0 %v328
        %v399 = vpop.f32.mrf.mxu0
        %v400 = vadd.f32 %v314, %v399
        %v401 = vpop.f32.mrf.mxu0
        %402 = vdwg.mxu0
        %v403 = vadd.f32 %v400, 3.0
        %v404 = vmax.f32 %v403, 0.0
        %v405 = vmin.f32 %v404, 6.0
        %v406 = vmul.f32 %v405, 0.16666667
        %v407 = vmul.f32 %v400, %v406
        %v408 = vld [vmem:[%s3] sm:$0xf]
        %v409 = vld [vmem:[%s4] sm:$0xf]
        %411 = vset.pattern.permute.xlu0 0
        %412 = vperm.xlu0 %411, %v409
        %v413 = vpop.permute.xlu0 %412
        %vm415 = vcmask 64512
        %v417 = vsel %vm415, %v408, 0
        %419 = vmatprep.subr.mxu0 0.0
        %420 = vmatpush1.msra.mxu0 0.0
        %421 = vmatprep.subr.mxu0 0.0
        %422 = vmatpush1.msra.mxu0 0.0
        %423 = vmatprep.subr.mxu0 0.0
        %424 = vmatpush1.msra.mxu0 0.0
        %425 = vmatprep.subr.mxu0 0.0
        %426 = vmatpush1.msra.mxu0 0.0
        %427 = vmatprep.subr.mxu0 0.0
        %428 = vmatpush1.msra.mxu0 0.0
        %429 = vmatprep.subr.mxu0 0.0
        %430 = vmatpush1.msra.mxu0 0.0
        %431 = vmatprep.subr.mxu0 0.0
        %432 = vmatpush1.msra.mxu0 0.0
        %433 = vmatprep.subr.mxu0 0.0
        %434 = vmatpush1.msra.mxu0 0.0
        %435 = vmatprep.subr.mxu0 0.0
        %436 = vmatpush1.msra.mxu0 0.0
        %437 = vmatprep.subr.mxu0 0.0
        %438 = vmatpush1.msra.mxu0 0.0
        %439 = vmatprep.subr.mxu0 0.0
        %440 = vmatpush1.msra.mxu0 0.0
        %441 = vmatprep.subr.mxu0 0.0
        %442 = vmatpush1.msra.mxu0 0.0
        %443 = vmatprep.subr.mxu0 0.0
        %444 = vmatpush1.msra.mxu0 0.0
        %445 = vmatprep.subr.mxu0 0.0
        %446 = vmatpush1.msra.mxu0 0.0
        %447 = vmatprep.subr.mxu0 0.0
        %448 = vmatpush1.msra.mxu0 0.0
        %449 = vmatprep.subr.mxu0 0.0
        %450 = vmatpush1.msra.mxu0 %v407
        %451 = vmatprep.subr.mxu0 0.0
        %452 = vmatpush2.msra.mxu0 0.0
        %453 = vmatprep.subr.mxu0 0.0
        %454 = vmatpush2.msra.mxu0 0.0
        %455 = vmatprep.subr.mxu0 0.0
        %456 = vmatpush2.msra.mxu0 0.0
        %457 = vmatprep.subr.mxu0 0.0
        %458 = vmatpush2.msra.mxu0 0.0
        %459 = vmatprep.subr.mxu0 0.0
        %460 = vmatpush2.msra.mxu0 0.0
        %461 = vmatprep.subr.mxu0 0.0
        %462 = vmatpush2.msra.mxu0 0.0
        %463 = vmatprep.subr.mxu0 0.0
        %464 = vmatpush2.msra.mxu0 0.0
        %465 = vmatprep.subr.mxu0 0.0
        %466 = vmatpush2.msra.mxu0 0.0
        %467 = vmatprep.subr.mxu0 0.0
        %468 = vmatpush2.msra.mxu0 0.0
        %469 = vmatprep.subr.mxu0 0.0
        %470 = vmatpush2.msra.mxu0 0.0
        %471 = vmatprep.subr.mxu0 0.0
        %472 = vmatpush2.msra.mxu0 0.0
        %473 = vmatprep.subr.mxu0 0.0
        %474 = vmatpush2.msra.mxu0 0.0
        %475 = vmatprep.subr.mxu0 0.0
        %476 = vmatpush2.msra.mxu0 0.0
        %477 = vmatprep.subr.mxu0 0.0
        %478 = vmatpush2.msra.mxu0 0.0
        %479 = vmatprep.subr.mxu0 0.0
        %480 = vmatpush2.msra.mxu0 0.0
        %481 = vmatprep.subr.mxu0 0.0
        %482 = vmatpush2.msra.mxu0 0.0
        %483 = vmatprep.mubr.f32.mxu0 0.0
        %484 = vmatmul.mubr.f32.gmra.mxu0 %v417
        %v485 = vpop.f32.mrf.mxu0
        %v486 = vadd.f32 %v413, %v485
        %v487 = vpop.f32.mrf.mxu0
        %488 = vdwg.mxu0
        %v489 = vxor.u32 %v486, 2147483648
        %v490 = vmul.f32 %v489, 1.442695
        %v491 = vpow.pop %v490
        %v492 = vadd.f32 %v491, 1.0
        %v493 = vrcp.pop %v492
        %v494 = vmul.f32 1.0, %v493
        %vm495 = vcmask 125952
        %496 = vst.msk [vmem:[%s259] sm:$0xf] %vm495, %v494
        %s497 = sand.u32 %s156, 1
        %s498 = scalar_lea.sflag [#allocation4], %s497
        %s499 = sand.u32 %s156, 1
        %s500 = smul.addr %s499, 4
        %s501 = scalar_lea.vmem [#allocation5], %s500
        // Predicated region
        $region45: #{tpu_custom_call.1} parent=39 // pred_check
          %p502 = pneg %p166
        $region46: #{tpu_custom_call.1} parent=39 // pred_check_branch
          %504 = sbr.rel (%p502) target = $region48
        $region47: #{tpu_custom_call.1} parent=39 // pred_region
          %s506 = ssub.s32 64, 64
          %507 = vsyncadd %s498, %s506
          %s508 = sadd.s32 %s27, %s26
          %s509 = smul.addr %s508, 64
          %s510 = scalar_lea.hbm %s5, %s509
          %s512 = sshll.u32 %s501, 4
          %s513 = int_to_ptr.vmem [resolvable:$true] %s512
          %515 = dma.vmem_to_hbm [thread:$0]  %s513, 64, %s510, %s498
        $region48: #{tpu_custom_call.1} parent=39 // pred_fallthru
          _
      $region40: #{tpu_custom_call.1} parent=5 // pred_fallthru
        _
      %p516 = scmp.le.s32.totalorder 2, %s17
      // Predicated region
      $region49: #{tpu_custom_call.1} parent=5 // pred_check
        %p517 = pneg %p516
      $region50: #{tpu_custom_call.1} parent=5 // pred_check_branch
        %519 = sbr.rel (%p517) target = $region52
      $region51: #{tpu_custom_call.1} parent=5 // pred_region
        %s520 = ssub.s32 %s17, 2
        // Predicated region
        $region53: #{tpu_custom_call.1} parent=51 // pred_check
          %p521 = pneg %p172
        $region54: #{tpu_custom_call.1} parent=51 // pred_check_branch
          %523 = sbr.rel (%p521) target = $region56
        $region55: #{tpu_custom_call.1} parent=51 // pred_region
          %s524 = sand.u32 %s157, 1
          %s525 = scalar_lea.sflag [#allocation4], %s524
          %s526 = sand.u32 %s157, 1
          %s527 = smul.addr %s526, 4
          %s528 = scalar_lea.vmem [#allocation5], %s527
          %529 = dma.done %s525, 64
        $region56: #{tpu_custom_call.1} parent=51 // pred_fallthru
          _
      $region52: #{tpu_custom_call.1} parent=5 // pred_fallthru
        _
    $region6: #{tpu_custom_call.1} parent=1 // loop_footer
      %s21 = sadd.s32 1, %s17
    $region7: #{tpu_custom_call.1} parent=1 // loop_footer_branch
      %16 = sbr.rel target = $region3
    $region8: #{tpu_custom_call.1} parent=1 // loop_exit
      _
    %530 = vsyncpa [#allocation3], 1
    %s531 = scalar_lea.sflag [#allocation3], 1
    %532 = vsyncpa %s531, 1
    %533 = vsyncpa [#allocation4], 1
    %s534 = scalar_lea.sflag [#allocation4], 1
    %535 = vsyncpa %s534, 1

</llo_original>
